<compile_context>
chip_gen: v7x
topology: tpu7x:2x2x1
jax: 0.10.0
libtpu: 0.0.40
codegen_flags: <defaults>
</compile_context>

<pallas_src>
import jax
import jax.numpy as jnp
from jax.experimental import pallas as pl
from jax.experimental.pallas import tpu as pltpu

C_IN, C1, C2, C_OUT = 4, 32, 16, 3
K, PAD = 9, 4
EPS = 1e-5


# --------------------------------- kernel -----------------------------------
def cnn_kernel(x_ref, w1_ref, b1_ref, g1_ref, be1_ref,
               w2_ref, b2_ref, g2_ref, be2_ref,
               w3_ref, b3_ref, y_ref):
    N, _, L = x_ref.shape
    NL = N * L

    # Flatten the batch into the lane axis: (C_IN, N*L).  x_ref[n] is a
    # lane-tile-aligned (C_IN, L) slice, so this concat is cheap.
    xf = jnp.concatenate([x_ref[n] for n in range(N)], axis=-1)

    # Per-tap validity masks: tap offset d reads position pos+d of the SAME
    # sample -> valid iff 0 <= pos + d < L, with pos = lane index mod L.
    pos = jax.lax.broadcasted_iota(jnp.int32, (1, NL), 1) % L
    masks = [jnp.logical_and(pos + (k - PAD) >= 0, pos + (k - PAD) < L)
             for k in range(K)]

    def im2col(h):
        # h: (Cin, NL) f32 -> (K*Cin, NL) bf16, rows ordered k-major / c-minor.
        pieces = []
        for k in range(K):
            d = k - PAD
            if d == 0:
                pieces.append(h)
            else:
                # result[t] = h[t + d] (wrap-around lands only on masked lanes)
                shifted = pltpu.roll(h, shift=(-d) % NL, axis=1)
                pieces.append(jnp.where(masks[k], shifted, 0.0))
        return jnp.concatenate(pieces, axis=0).astype(jnp.bfloat16)

    def bn_relu(h, g, be):
        # Training-mode BatchNorm1d: biased variance over (N, L), computed in
        # one pass (sum & sum-of-squares), fused with the affine + ReLU.
        inv = 1.0 / NL
        s1 = jnp.sum(h, axis=1, keepdims=True) * inv        # mean    (C, 1)
        s2 = jnp.sum(h * h, axis=1, keepdims=True) * inv    # E[x^2]  (C, 1)
        var = jnp.maximum(s2 - s1 * s1, 0.0)                 # clamp >= 0
        scale = g * jax.lax.rsqrt(var + EPS)
        shift = be - s1 * scale
        return jnp.maximum(h * scale + shift, 0.0)

    # conv1 (4 -> 32, k=9, pad=4) + bn1 + relu    -- one MXU matmul
    h1 = jnp.dot(w1_ref[...], im2col(xf),
                 preferred_element_type=jnp.float32) + b1_ref[...]
    h1 = bn_relu(h1, g1_ref[...], be1_ref[...])

    # conv2 (32 -> 16, k=9, pad=4) + bn2 + relu   -- one MXU matmul
    h2 = jnp.dot(w2_ref[...], im2col(h1),
                 preferred_element_type=jnp.float32) + b2_ref[...]
    h2 = bn_relu(h2, g2_ref[...], be2_ref[...])

    # conv3 (16 -> 3, k=1)                         -- one MXU matmul
    y = jnp.dot(w3_ref[...], h2.astype(jnp.bfloat16),
                preferred_element_type=jnp.float32) + b3_ref[...]
    y_ref[...] = y                                  # lane-dense (3, N*L) store


# -------------------------------- wrapper ------------------------------------
@jax.jit
def simple_cnn_forward(x, params):
    N, _, L = x.shape
    (w1, b1, g1, be1, w2, b2, g2, be2, w3, b3) = params

    # One-time weight repack OUTSIDE the kernel: (Cout, Cin, K) -> (Cout, K*Cin)
    # bf16, row order k-major / c-minor, matching the in-kernel im2col layout.
    w1c = jnp.transpose(w1, (0, 2, 1)).reshape(C1, K * C_IN).astype(jnp.bfloat16)
    w2c = jnp.transpose(w2, (0, 2, 1)).reshape(C2, K * C1).astype(jnp.bfloat16)
    w3c = w3.reshape(C_OUT, C2).astype(jnp.bfloat16)

    vmem = pl.BlockSpec(memory_space=pltpu.MemorySpace.VMEM)
    y_flat = pl.pallas_call(
        cnn_kernel,
        out_shape=jax.ShapeDtypeStruct((C_OUT, N * L), jnp.float32),
        in_specs=[vmem] * 11,
        out_specs=vmem,
    )(x, w1c, b1, g1, be1, w2c, b2, g2, be2, w3c, b3)

    # Lane-dense (C_OUT, N*L) -> (N, C_OUT, L): pure layout plumbing.
    return jnp.transpose(y_flat.reshape(C_OUT, N, L), (1, 0, 2))


# ------------------------- deterministic parameters --------------------------
def init_params(key):
    ks = jax.random.split(key, 10)
    w1 = 0.10 * jax.random.normal(ks[0], (C1, C_IN, K), jnp.float32)
    b1 = 0.10 * jax.random.normal(ks[1], (C1, 1), jnp.float32)
    g1 = 1.0 + 0.10 * jax.random.normal(ks[2], (C1, 1), jnp.float32)
    be1 = 0.10 * jax.random.normal(ks[3], (C1, 1), jnp.float32)
    w2 = 0.05 * jax.random.normal(ks[4], (C2, C1, K), jnp.float32)
    b2 = 0.10 * jax.random.normal(ks[5], (C2, 1), jnp.float32)
    g2 = 1.0 + 0.10 * jax.random.normal(ks[6], (C2, 1), jnp.float32)
    be2 = 0.10 * jax.random.normal(ks[7], (C2, 1), jnp.float32)
    w3 = 0.10 * jax.random.normal(ks[8], (C_OUT, C2, 1), jnp.float32)
    b3 = 0.10 * jax.random.normal(ks[9], (C_OUT, 1), jnp.float32)
    return (w1, b1, g1, be1, w2, b2, g2, be2, w3, b3)


# ---------------------------- pure-JAX reference ------------------------------
def reference(x, params):
    (w1, b1, g1, be1, w2, b2, g2, be2, w3, b3) = params

    def conv(x, w, b, pad):
        y = jax.lax.conv_general_dilated(
            x, w, window_strides=(1,), padding=[(pad, pad)],
            dimension_numbers=('NCH', 'OIH', 'NCH'))
        return y + b[None, :, :]

    def bn_relu(h, g, be):
        mean = jnp.mean(h, axis=(0, 2), keepdims=True)
        var = jnp.mean((h - mean) ** 2, axis=(0, 2), keepdims=True)
        hn = (h - mean) / jnp.sqrt(var + EPS)
        return jnp.maximum(hn * g[None, :, :] + be[None, :, :], 0.0)

    h = bn_relu(conv(x, w1, b1, PAD), g1, be1)
    h = bn_relu(conv(h, w2, b2, PAD), g2, be2)
    return conv(h, w3, b3, 0)


if __name__ == "__main__":
    key = jax.random.PRNGKey(0)
    kx, kp = jax.random.split(key)
    params = init_params(kp)
    x = jax.random.normal(kx, (2, C_IN, 128), jnp.float32)   # (N=2, C=4, L=128)

    y = simple_cnn_forward(x, params)
    jax.block_until_ready(y)

    y_ref = reference(x, params)
    err = float(jnp.max(jnp.abs(y - y_ref)))
    assert y.shape == (2, C_OUT, 128), y.shape
    assert err < 5e-2, f"max abs error vs reference: {err}"
    print("KERNEL_OK")
</pallas_src>

<mosaic_0001>
module attributes {stable_mosaic.version = 11 : i64} {
  func.func @cnn_kernel(%arg0: memref<2x4x128xf32, #tpu.memory_space<vmem>>, %arg1: memref<32x36xbf16, #tpu.memory_space<vmem>>, %arg2: memref<32x1xf32, #tpu.memory_space<vmem>>, %arg3: memref<32x1xf32, #tpu.memory_space<vmem>>, %arg4: memref<32x1xf32, #tpu.memory_space<vmem>>, %arg5: memref<16x288xbf16, #tpu.memory_space<vmem>>, %arg6: memref<16x1xf32, #tpu.memory_space<vmem>>, %arg7: memref<16x1xf32, #tpu.memory_space<vmem>>, %arg8: memref<16x1xf32, #tpu.memory_space<vmem>>, %arg9: memref<3x16xbf16, #tpu.memory_space<vmem>>, %arg10: memref<3x1xf32, #tpu.memory_space<vmem>>, %arg11: memref<3x256xf32, #tpu.memory_space<vmem>>) attributes {dimension_semantics = [], scalar_prefetch = 0 : i64, scratch_operands = 0 : i64, tpu.core_type = #tpu.core_type<tc>} {
    %c0 = arith.constant 0 : index
    %c0_0 = arith.constant 0 : index
    %c0_1 = arith.constant 0 : index
    %0 = vector.load %arg0[%c0, %c0_0, %c0_1] : memref<2x4x128xf32, #tpu.memory_space<vmem>>, vector<1x4x128xf32>
    %1 = vector.shape_cast %0 : vector<1x4x128xf32> to vector<4x128xf32>
    %c1 = arith.constant 1 : index
    %c0_2 = arith.constant 0 : index
    %c0_3 = arith.constant 0 : index
    %2 = vector.load %arg0[%c1, %c0_2, %c0_3] : memref<2x4x128xf32, #tpu.memory_space<vmem>>, vector<1x4x128xf32>
    %3 = vector.shape_cast %2 : vector<1x4x128xf32> to vector<4x128xf32>
    %4 = tpu.concatenate %1, %3 in 1 : vector<4x128xf32>, vector<4x128xf32> -> vector<4x256xf32>
    %5 = tpu.iota {dimensions = array<i32: 1>} : vector<1x256xi32>
    %c128_i32 = arith.constant 128 : i32
    %c0_i32 = arith.constant 0 : i32
    %6 = arith.cmpi eq, %c128_i32, %c0_i32 : i32
    %c1_i32 = arith.constant 1 : i32
    %7 = arith.select %6, %c1_i32, %c128_i32 : i32
    %8 = vector.broadcast %7 : i32 to vector<1x256xi32>
    %9 = arith.remsi %5, %8 : vector<1x256xi32>
    %c0_i32_4 = arith.constant 0 : i32
    %10 = vector.broadcast %c0_i32_4 : i32 to vector<1x256xi32>
    %11 = arith.cmpi ne, %9, %10 : vector<1x256xi32>
    %c0_i32_5 = arith.constant 0 : i32
    %12 = vector.broadcast %c0_i32_5 : i32 to vector<1x256xi32>
    %13 = arith.cmpi slt, %9, %12 : vector<1x256xi32>
    %c0_i32_6 = arith.constant 0 : i32
    %14 = arith.cmpi slt, %7, %c0_i32_6 : i32
    %15 = vector.broadcast %14 : i1 to vector<1x256xi1>
    %16 = vector.broadcast %15 : vector<1x256xi1> to vector<1x256xi1>
    %17 = arith.xori %13, %16 : vector<1x256xi1>
    %18 = arith.andi %17, %11 : vector<1x256xi1>
    %19 = vector.broadcast %7 : i32 to vector<1x256xi32>
    %20 = arith.addi %9, %19 : vector<1x256xi32>
    %21 = arith.select %18, %20, %9 : vector<1x256xi1>, vector<1x256xi32>
    %c-4_i32 = arith.constant -4 : i32
    %22 = vector.broadcast %c-4_i32 : i32 to vector<1x256xi32>
    %23 = arith.addi %21, %22 : vector<1x256xi32>
    %c0_i32_7 = arith.constant 0 : i32
    %24 = vector.broadcast %c0_i32_7 : i32 to vector<1x256xi32>
    %25 = arith.cmpi sge, %23, %24 : vector<1x256xi32>
    %c-4_i32_8 = arith.constant -4 : i32
    %26 = vector.broadcast %c-4_i32_8 : i32 to vector<1x256xi32>
    %27 = arith.addi %21, %26 : vector<1x256xi32>
    %c128_i32_9 = arith.constant 128 : i32
    %28 = vector.broadcast %c128_i32_9 : i32 to vector<1x256xi32>
    %29 = arith.cmpi slt, %27, %28 : vector<1x256xi32>
    %30 = arith.andi %25, %29 : vector<1x256xi1>
    %c-3_i32 = arith.constant -3 : i32
    %31 = vector.broadcast %c-3_i32 : i32 to vector<1x256xi32>
    %32 = arith.addi %21, %31 : vector<1x256xi32>
    %c0_i32_10 = arith.constant 0 : i32
    %33 = vector.broadcast %c0_i32_10 : i32 to vector<1x256xi32>
    %34 = arith.cmpi sge, %32, %33 : vector<1x256xi32>
    %c-3_i32_11 = arith.constant -3 : i32
    %35 = vector.broadcast %c-3_i32_11 : i32 to vector<1x256xi32>
    %36 = arith.addi %21, %35 : vector<1x256xi32>
    %c128_i32_12 = arith.constant 128 : i32
    %37 = vector.broadcast %c128_i32_12 : i32 to vector<1x256xi32>
    %38 = arith.cmpi slt, %36, %37 : vector<1x256xi32>
    %39 = arith.andi %34, %38 : vector<1x256xi1>
    %c-2_i32 = arith.constant -2 : i32
    %40 = vector.broadcast %c-2_i32 : i32 to vector<1x256xi32>
    %41 = arith.addi %21, %40 : vector<1x256xi32>
    %c0_i32_13 = arith.constant 0 : i32
    %42 = vector.broadcast %c0_i32_13 : i32 to vector<1x256xi32>
    %43 = arith.cmpi sge, %41, %42 : vector<1x256xi32>
    %c-2_i32_14 = arith.constant -2 : i32
    %44 = vector.broadcast %c-2_i32_14 : i32 to vector<1x256xi32>
    %45 = arith.addi %21, %44 : vector<1x256xi32>
    %c128_i32_15 = arith.constant 128 : i32
    %46 = vector.broadcast %c128_i32_15 : i32 to vector<1x256xi32>
    %47 = arith.cmpi slt, %45, %46 : vector<1x256xi32>
    %48 = arith.andi %43, %47 : vector<1x256xi1>
    %c-1_i32 = arith.constant -1 : i32
    %49 = vector.broadcast %c-1_i32 : i32 to vector<1x256xi32>
    %50 = arith.addi %21, %49 : vector<1x256xi32>
    %c0_i32_16 = arith.constant 0 : i32
    %51 = vector.broadcast %c0_i32_16 : i32 to vector<1x256xi32>
    %52 = arith.cmpi sge, %50, %51 : vector<1x256xi32>
    %c-1_i32_17 = arith.constant -1 : i32
    %53 = vector.broadcast %c-1_i32_17 : i32 to vector<1x256xi32>
    %54 = arith.addi %21, %53 : vector<1x256xi32>
    %c128_i32_18 = arith.constant 128 : i32
    %55 = vector.broadcast %c128_i32_18 : i32 to vector<1x256xi32>
    %56 = arith.cmpi slt, %54, %55 : vector<1x256xi32>
    %57 = arith.andi %52, %56 : vector<1x256xi1>
    %c1_i32_19 = arith.constant 1 : i32
    %58 = vector.broadcast %c1_i32_19 : i32 to vector<1x256xi32>
    %59 = arith.addi %21, %58 : vector<1x256xi32>
    %c0_i32_20 = arith.constant 0 : i32
    %60 = vector.broadcast %c0_i32_20 : i32 to vector<1x256xi32>
    %61 = arith.cmpi sge, %59, %60 : vector<1x256xi32>
    %c1_i32_21 = arith.constant 1 : i32
    %62 = vector.broadcast %c1_i32_21 : i32 to vector<1x256xi32>
    %63 = arith.addi %21, %62 : vector<1x256xi32>
    %c128_i32_22 = arith.constant 128 : i32
    %64 = vector.broadcast %c128_i32_22 : i32 to vector<1x256xi32>
    %65 = arith.cmpi slt, %63, %64 : vector<1x256xi32>
    %66 = arith.andi %61, %65 : vector<1x256xi1>
    %c2_i32 = arith.constant 2 : i32
    %67 = vector.broadcast %c2_i32 : i32 to vector<1x256xi32>
    %68 = arith.addi %21, %67 : vector<1x256xi32>
    %c0_i32_23 = arith.constant 0 : i32
    %69 = vector.broadcast %c0_i32_23 : i32 to vector<1x256xi32>
    %70 = arith.cmpi sge, %68, %69 : vector<1x256xi32>
    %c2_i32_24 = arith.constant 2 : i32
    %71 = vector.broadcast %c2_i32_24 : i32 to vector<1x256xi32>
    %72 = arith.addi %21, %71 : vector<1x256xi32>
    %c128_i32_25 = arith.constant 128 : i32
    %73 = vector.broadcast %c128_i32_25 : i32 to vector<1x256xi32>
    %74 = arith.cmpi slt, %72, %73 : vector<1x256xi32>
    %75 = arith.andi %70, %74 : vector<1x256xi1>
    %c3_i32 = arith.constant 3 : i32
    %76 = vector.broadcast %c3_i32 : i32 to vector<1x256xi32>
    %77 = arith.addi %21, %76 : vector<1x256xi32>
    %c0_i32_26 = arith.constant 0 : i32
    %78 = vector.broadcast %c0_i32_26 : i32 to vector<1x256xi32>
    %79 = arith.cmpi sge, %77, %78 : vector<1x256xi32>
    %c3_i32_27 = arith.constant 3 : i32
    %80 = vector.broadcast %c3_i32_27 : i32 to vector<1x256xi32>
    %81 = arith.addi %21, %80 : vector<1x256xi32>
    %c128_i32_28 = arith.constant 128 : i32
    %82 = vector.broadcast %c128_i32_28 : i32 to vector<1x256xi32>
    %83 = arith.cmpi slt, %81, %82 : vector<1x256xi32>
    %84 = arith.andi %79, %83 : vector<1x256xi1>
    %c4_i32 = arith.constant 4 : i32
    %85 = vector.broadcast %c4_i32 : i32 to vector<1x256xi32>
    %86 = arith.addi %21, %85 : vector<1x256xi32>
    %c0_i32_29 = arith.constant 0 : i32
    %87 = vector.broadcast %c0_i32_29 : i32 to vector<1x256xi32>
    %88 = arith.cmpi sge, %86, %87 : vector<1x256xi32>
    %c4_i32_30 = arith.constant 4 : i32
    %89 = vector.broadcast %c4_i32_30 : i32 to vector<1x256xi32>
    %90 = arith.addi %21, %89 : vector<1x256xi32>
    %c128_i32_31 = arith.constant 128 : i32
    %91 = vector.broadcast %c128_i32_31 : i32 to vector<1x256xi32>
    %92 = arith.cmpi slt, %90, %91 : vector<1x256xi32>
    %93 = arith.andi %88, %92 : vector<1x256xi1>
    %c0_32 = arith.constant 0 : index
    %c0_33 = arith.constant 0 : index
    %94 = vector.load %arg1[%c0_32, %c0_33] : memref<32x36xbf16, #tpu.memory_space<vmem>>, vector<32x36xbf16>
    %c4_i32_34 = arith.constant 4 : i32
    %95 = tpu.dynamic_rotate %4 by %c4_i32_34 dim 1 : vector<4x256xf32>, i32 -> vector<4x256xf32>
    %cst = arith.constant 0.000000e+00 : f32
    %96 = vector.shape_cast %30 : vector<1x256xi1> to vector<1x256xi1>
    %97 = vector.broadcast %96 : vector<1x256xi1> to vector<4x256xi1>
    %98 = vector.broadcast %cst : f32 to vector<4x256xf32>
    %99 = arith.select %97, %95, %98 : vector<4x256xi1>, vector<4x256xf32>
    %c3_i32_35 = arith.constant 3 : i32
    %100 = tpu.dynamic_rotate %4 by %c3_i32_35 dim 1 : vector<4x256xf32>, i32 -> vector<4x256xf32>
    %cst_36 = arith.constant 0.000000e+00 : f32
    %101 = vector.shape_cast %39 : vector<1x256xi1> to vector<1x256xi1>
    %102 = vector.broadcast %101 : vector<1x256xi1> to vector<4x256xi1>
    %103 = vector.broadcast %cst_36 : f32 to vector<4x256xf32>
    %104 = arith.select %102, %100, %103 : vector<4x256xi1>, vector<4x256xf32>
    %c2_i32_37 = arith.constant 2 : i32
    %105 = tpu.dynamic_rotate %4 by %c2_i32_37 dim 1 : vector<4x256xf32>, i32 -> vector<4x256xf32>
    %cst_38 = arith.constant 0.000000e+00 : f32
    %106 = vector.shape_cast %48 : vector<1x256xi1> to vector<1x256xi1>
    %107 = vector.broadcast %106 : vector<1x256xi1> to vector<4x256xi1>
    %108 = vector.broadcast %cst_38 : f32 to vector<4x256xf32>
    %109 = arith.select %107, %105, %108 : vector<4x256xi1>, vector<4x256xf32>
    %c1_i32_39 = arith.constant 1 : i32
    %110 = tpu.dynamic_rotate %4 by %c1_i32_39 dim 1 : vector<4x256xf32>, i32 -> vector<4x256xf32>
    %cst_40 = arith.constant 0.000000e+00 : f32
    %111 = vector.shape_cast %57 : vector<1x256xi1> to vector<1x256xi1>
    %112 = vector.broadcast %111 : vector<1x256xi1> to vector<4x256xi1>
    %113 = vector.broadcast %cst_40 : f32 to vector<4x256xf32>
    %114 = arith.select %112, %110, %113 : vector<4x256xi1>, vector<4x256xf32>
    %c255_i32 = arith.constant 255 : i32
    %115 = tpu.dynamic_rotate %4 by %c255_i32 dim 1 : vector<4x256xf32>, i32 -> vector<4x256xf32>
    %cst_41 = arith.constant 0.000000e+00 : f32
    %116 = vector.shape_cast %66 : vector<1x256xi1> to vector<1x256xi1>
    %117 = vector.broadcast %116 : vector<1x256xi1> to vector<4x256xi1>
    %118 = vector.broadcast %cst_41 : f32 to vector<4x256xf32>
    %119 = arith.select %117, %115, %118 : vector<4x256xi1>, vector<4x256xf32>
    %c254_i32 = arith.constant 254 : i32
    %120 = tpu.dynamic_rotate %4 by %c254_i32 dim 1 : vector<4x256xf32>, i32 -> vector<4x256xf32>
    %cst_42 = arith.constant 0.000000e+00 : f32
    %121 = vector.shape_cast %75 : vector<1x256xi1> to vector<1x256xi1>
    %122 = vector.broadcast %121 : vector<1x256xi1> to vector<4x256xi1>
    %123 = vector.broadcast %cst_42 : f32 to vector<4x256xf32>
    %124 = arith.select %122, %120, %123 : vector<4x256xi1>, vector<4x256xf32>
    %c253_i32 = arith.constant 253 : i32
    %125 = tpu.dynamic_rotate %4 by %c253_i32 dim 1 : vector<4x256xf32>, i32 -> vector<4x256xf32>
    %cst_43 = arith.constant 0.000000e+00 : f32
    %126 = vector.shape_cast %84 : vector<1x256xi1> to vector<1x256xi1>
    %127 = vector.broadcast %126 : vector<1x256xi1> to vector<4x256xi1>
    %128 = vector.broadcast %cst_43 : f32 to vector<4x256xf32>
    %129 = arith.select %127, %125, %128 : vector<4x256xi1>, vector<4x256xf32>
    %c252_i32 = arith.constant 252 : i32
    %130 = tpu.dynamic_rotate %4 by %c252_i32 dim 1 : vector<4x256xf32>, i32 -> vector<4x256xf32>
    %cst_44 = arith.constant 0.000000e+00 : f32
    %131 = vector.shape_cast %93 : vector<1x256xi1> to vector<1x256xi1>
    %132 = vector.broadcast %131 : vector<1x256xi1> to vector<4x256xi1>
    %133 = vector.broadcast %cst_44 : f32 to vector<4x256xf32>
    %134 = arith.select %132, %130, %133 : vector<4x256xi1>, vector<4x256xf32>
    %135 = tpu.concatenate %99, %104, %109, %114, %4, %119, %124, %129, %134 in 0 : vector<4x256xf32>, vector<4x256xf32>, vector<4x256xf32>, vector<4x256xf32>, vector<4x256xf32>, vector<4x256xf32>, vector<4x256xf32>, vector<4x256xf32>, vector<4x256xf32> -> vector<36x256xf32>
    %136 = arith.truncf %135 : vector<36x256xf32> to vector<36x256xbf16>
    %cst_45 = arith.constant dense<0.000000e+00> : vector<32x256xf32>
    %137 = tpu.matmul %94, %136, %cst_45 {dimension_numbers = #tpu.dot_dimension_numbers<[1], [0], [0], [1], [0, 0, 1, 1], [], []>} : vector<32x36xbf16>, vector<36x256xbf16>, vector<32x256xf32> -> vector<32x256xf32>
    %c0_46 = arith.constant 0 : index
    %c0_47 = arith.constant 0 : index
    %138 = vector.load %arg2[%c0_46, %c0_47] : memref<32x1xf32, #tpu.memory_space<vmem>>, vector<32x1xf32>
    %139 = vector.broadcast %138 : vector<32x1xf32> to vector<32x256xf32>
    %140 = arith.addf %137, %139 : vector<32x256xf32>
    %c0_48 = arith.constant 0 : index
    %c0_49 = arith.constant 0 : index
    %141 = vector.load %arg3[%c0_48, %c0_49] : memref<32x1xf32, #tpu.memory_space<vmem>>, vector<32x1xf32>
    %c0_50 = arith.constant 0 : index
    %c0_51 = arith.constant 0 : index
    %142 = vector.load %arg4[%c0_50, %c0_51] : memref<32x1xf32, #tpu.memory_space<vmem>>, vector<32x1xf32>
    %cst_52 = arith.constant dense<0.000000e+00> : vector<32xf32>
    %143 = vector.multi_reduction <add>, %140, %cst_52 [1] : vector<32x256xf32> to vector<32xf32>
    %144 = vector.shape_cast %143 : vector<32xf32> to vector<32x1xf32>
    %cst_53 = arith.constant 3.906250e-03 : f32
    %145 = vector.broadcast %cst_53 : f32 to vector<32x1xf32>
    %146 = arith.mulf %144, %145 : vector<32x1xf32>
    %147 = arith.mulf %140, %140 : vector<32x256xf32>
    %cst_54 = arith.constant dense<0.000000e+00> : vector<32xf32>
    %148 = vector.multi_reduction <add>, %147, %cst_54 [1] : vector<32x256xf32> to vector<32xf32>
    %149 = vector.shape_cast %148 : vector<32xf32> to vector<32x1xf32>
    %cst_55 = arith.constant 3.906250e-03 : f32
    %150 = vector.broadcast %cst_55 : f32 to vector<32x1xf32>
    %151 = arith.mulf %149, %150 : vector<32x1xf32>
    %152 = arith.mulf %146, %146 : vector<32x1xf32>
    %153 = arith.subf %151, %152 : vector<32x1xf32>
    %cst_56 = arith.constant 0.000000e+00 : f32
    %154 = vector.broadcast %cst_56 : f32 to vector<32x1xf32>
    %155 = arith.maximumf %153, %154 : vector<32x1xf32>
    %cst_57 = arith.constant 9.99999974E-6 : f32
    %156 = vector.broadcast %cst_57 : f32 to vector<32x1xf32>
    %157 = arith.addf %155, %156 : vector<32x1xf32>
    %158 = math.rsqrt %157 : vector<32x1xf32>
    %159 = arith.mulf %141, %158 : vector<32x1xf32>
    %160 = arith.mulf %146, %159 : vector<32x1xf32>
    %161 = arith.subf %142, %160 : vector<32x1xf32>
    %162 = vector.broadcast %159 : vector<32x1xf32> to vector<32x256xf32>
    %163 = arith.mulf %140, %162 : vector<32x256xf32>
    %164 = vector.broadcast %161 : vector<32x1xf32> to vector<32x256xf32>
    %165 = arith.addf %163, %164 : vector<32x256xf32>
    %cst_58 = arith.constant 0.000000e+00 : f32
    %166 = vector.broadcast %cst_58 : f32 to vector<32x256xf32>
    %167 = arith.maximumf %165, %166 : vector<32x256xf32>
    %c0_59 = arith.constant 0 : index
    %c0_60 = arith.constant 0 : index
    %168 = vector.load %arg5[%c0_59, %c0_60] : memref<16x288xbf16, #tpu.memory_space<vmem>>, vector<16x288xbf16>
    %c4_i32_61 = arith.constant 4 : i32
    %169 = tpu.dynamic_rotate %167 by %c4_i32_61 dim 1 : vector<32x256xf32>, i32 -> vector<32x256xf32>
    %cst_62 = arith.constant 0.000000e+00 : f32
    %170 = vector.shape_cast %30 : vector<1x256xi1> to vector<1x256xi1>
    %171 = vector.broadcast %170 : vector<1x256xi1> to vector<32x256xi1>
    %172 = vector.broadcast %cst_62 : f32 to vector<32x256xf32>
    %173 = arith.select %171, %169, %172 : vector<32x256xi1>, vector<32x256xf32>
    %c3_i32_63 = arith.constant 3 : i32
    %174 = tpu.dynamic_rotate %167 by %c3_i32_63 dim 1 : vector<32x256xf32>, i32 -> vector<32x256xf32>
    %cst_64 = arith.constant 0.000000e+00 : f32
    %175 = vector.shape_cast %39 : vector<1x256xi1> to vector<1x256xi1>
    %176 = vector.broadcast %175 : vector<1x256xi1> to vector<32x256xi1>
    %177 = vector.broadcast %cst_64 : f32 to vector<32x256xf32>
    %178 = arith.select %176, %174, %177 : vector<32x256xi1>, vector<32x256xf32>
    %c2_i32_65 = arith.constant 2 : i32
    %179 = tpu.dynamic_rotate %167 by %c2_i32_65 dim 1 : vector<32x256xf32>, i32 -> vector<32x256xf32>
    %cst_66 = arith.constant 0.000000e+00 : f32
    %180 = vector.shape_cast %48 : vector<1x256xi1> to vector<1x256xi1>
    %181 = vector.broadcast %180 : vector<1x256xi1> to vector<32x256xi1>
    %182 = vector.broadcast %cst_66 : f32 to vector<32x256xf32>
    %183 = arith.select %181, %179, %182 : vector<32x256xi1>, vector<32x256xf32>
    %c1_i32_67 = arith.constant 1 : i32
    %184 = tpu.dynamic_rotate %167 by %c1_i32_67 dim 1 : vector<32x256xf32>, i32 -> vector<32x256xf32>
    %cst_68 = arith.constant 0.000000e+00 : f32
    %185 = vector.shape_cast %57 : vector<1x256xi1> to vector<1x256xi1>
    %186 = vector.broadcast %185 : vector<1x256xi1> to vector<32x256xi1>
    %187 = vector.broadcast %cst_68 : f32 to vector<32x256xf32>
    %188 = arith.select %186, %184, %187 : vector<32x256xi1>, vector<32x256xf32>
    %c255_i32_69 = arith.constant 255 : i32
    %189 = tpu.dynamic_rotate %167 by %c255_i32_69 dim 1 : vector<32x256xf32>, i32 -> vector<32x256xf32>
    %cst_70 = arith.constant 0.000000e+00 : f32
    %190 = vector.shape_cast %66 : vector<1x256xi1> to vector<1x256xi1>
    %191 = vector.broadcast %190 : vector<1x256xi1> to vector<32x256xi1>
    %192 = vector.broadcast %cst_70 : f32 to vector<32x256xf32>
    %193 = arith.select %191, %189, %192 : vector<32x256xi1>, vector<32x256xf32>
    %c254_i32_71 = arith.constant 254 : i32
    %194 = tpu.dynamic_rotate %167 by %c254_i32_71 dim 1 : vector<32x256xf32>, i32 -> vector<32x256xf32>
    %cst_72 = arith.constant 0.000000e+00 : f32
    %195 = vector.shape_cast %75 : vector<1x256xi1> to vector<1x256xi1>
    %196 = vector.broadcast %195 : vector<1x256xi1> to vector<32x256xi1>
    %197 = vector.broadcast %cst_72 : f32 to vector<32x256xf32>
    %198 = arith.select %196, %194, %197 : vector<32x256xi1>, vector<32x256xf32>
    %c253_i32_73 = arith.constant 253 : i32
    %199 = tpu.dynamic_rotate %167 by %c253_i32_73 dim 1 : vector<32x256xf32>, i32 -> vector<32x256xf32>
    %cst_74 = arith.constant 0.000000e+00 : f32
    %200 = vector.shape_cast %84 : vector<1x256xi1> to vector<1x256xi1>
    %201 = vector.broadcast %200 : vector<1x256xi1> to vector<32x256xi1>
    %202 = vector.broadcast %cst_74 : f32 to vector<32x256xf32>
    %203 = arith.select %201, %199, %202 : vector<32x256xi1>, vector<32x256xf32>
    %c252_i32_75 = arith.constant 252 : i32
    %204 = tpu.dynamic_rotate %167 by %c252_i32_75 dim 1 : vector<32x256xf32>, i32 -> vector<32x256xf32>
    %cst_76 = arith.constant 0.000000e+00 : f32
    %205 = vector.shape_cast %93 : vector<1x256xi1> to vector<1x256xi1>
    %206 = vector.broadcast %205 : vector<1x256xi1> to vector<32x256xi1>
    %207 = vector.broadcast %cst_76 : f32 to vector<32x256xf32>
    %208 = arith.select %206, %204, %207 : vector<32x256xi1>, vector<32x256xf32>
    %209 = tpu.concatenate %173, %178, %183, %188, %167, %193, %198, %203, %208 in 0 : vector<32x256xf32>, vector<32x256xf32>, vector<32x256xf32>, vector<32x256xf32>, vector<32x256xf32>, vector<32x256xf32>, vector<32x256xf32>, vector<32x256xf32>, vector<32x256xf32> -> vector<288x256xf32>
    %210 = arith.truncf %209 : vector<288x256xf32> to vector<288x256xbf16>
    %cst_77 = arith.constant dense<0.000000e+00> : vector<16x256xf32>
    %211 = tpu.matmul %168, %210, %cst_77 {dimension_numbers = #tpu.dot_dimension_numbers<[1], [0], [0], [1], [0, 0, 1, 1], [], []>} : vector<16x288xbf16>, vector<288x256xbf16>, vector<16x256xf32> -> vector<16x256xf32>
    %c0_78 = arith.constant 0 : index
    %c0_79 = arith.constant 0 : index
    %212 = vector.load %arg6[%c0_78, %c0_79] : memref<16x1xf32, #tpu.memory_space<vmem>>, vector<16x1xf32>
    %213 = vector.broadcast %212 : vector<16x1xf32> to vector<16x256xf32>
    %214 = arith.addf %211, %213 : vector<16x256xf32>
    %c0_80 = arith.constant 0 : index
    %c0_81 = arith.constant 0 : index
    %215 = vector.load %arg7[%c0_80, %c0_81] : memref<16x1xf32, #tpu.memory_space<vmem>>, vector<16x1xf32>
    %c0_82 = arith.constant 0 : index
    %c0_83 = arith.constant 0 : index
    %216 = vector.load %arg8[%c0_82, %c0_83] : memref<16x1xf32, #tpu.memory_space<vmem>>, vector<16x1xf32>
    %cst_84 = arith.constant dense<0.000000e+00> : vector<16xf32>
    %217 = vector.multi_reduction <add>, %214, %cst_84 [1] : vector<16x256xf32> to vector<16xf32>
    %218 = vector.shape_cast %217 : vector<16xf32> to vector<16x1xf32>
    %cst_85 = arith.constant 3.906250e-03 : f32
    %219 = vector.broadcast %cst_85 : f32 to vector<16x1xf32>
    %220 = arith.mulf %218, %219 : vector<16x1xf32>
    %221 = arith.mulf %214, %214 : vector<16x256xf32>
    %cst_86 = arith.constant dense<0.000000e+00> : vector<16xf32>
    %222 = vector.multi_reduction <add>, %221, %cst_86 [1] : vector<16x256xf32> to vector<16xf32>
    %223 = vector.shape_cast %222 : vector<16xf32> to vector<16x1xf32>
    %cst_87 = arith.constant 3.906250e-03 : f32
    %224 = vector.broadcast %cst_87 : f32 to vector<16x1xf32>
    %225 = arith.mulf %223, %224 : vector<16x1xf32>
    %226 = arith.mulf %220, %220 : vector<16x1xf32>
    %227 = arith.subf %225, %226 : vector<16x1xf32>
    %cst_88 = arith.constant 0.000000e+00 : f32
    %228 = vector.broadcast %cst_88 : f32 to vector<16x1xf32>
    %229 = arith.maximumf %227, %228 : vector<16x1xf32>
    %cst_89 = arith.constant 9.99999974E-6 : f32
    %230 = vector.broadcast %cst_89 : f32 to vector<16x1xf32>
    %231 = arith.addf %229, %230 : vector<16x1xf32>
    %232 = math.rsqrt %231 : vector<16x1xf32>
    %233 = arith.mulf %215, %232 : vector<16x1xf32>
    %234 = arith.mulf %220, %233 : vector<16x1xf32>
    %235 = arith.subf %216, %234 : vector<16x1xf32>
    %236 = vector.broadcast %233 : vector<16x1xf32> to vector<16x256xf32>
    %237 = arith.mulf %214, %236 : vector<16x256xf32>
    %238 = vector.broadcast %235 : vector<16x1xf32> to vector<16x256xf32>
    %239 = arith.addf %237, %238 : vector<16x256xf32>
    %cst_90 = arith.constant 0.000000e+00 : f32
    %240 = vector.broadcast %cst_90 : f32 to vector<16x256xf32>
    %241 = arith.maximumf %239, %240 : vector<16x256xf32>
    %c0_91 = arith.constant 0 : index
    %c0_92 = arith.constant 0 : index
    %242 = vector.load %arg9[%c0_91, %c0_92] : memref<3x16xbf16, #tpu.memory_space<vmem>>, vector<3x16xbf16>
    %243 = arith.truncf %241 : vector<16x256xf32> to vector<16x256xbf16>
    %cst_93 = arith.constant dense<0.000000e+00> : vector<3x256xf32>
    %244 = tpu.matmul %242, %243, %cst_93 {dimension_numbers = #tpu.dot_dimension_numbers<[1], [0], [0], [1], [0, 0, 1, 1], [], []>} : vector<3x16xbf16>, vector<16x256xbf16>, vector<3x256xf32> -> vector<3x256xf32>
    %c0_94 = arith.constant 0 : index
    %c0_95 = arith.constant 0 : index
    %245 = vector.load %arg10[%c0_94, %c0_95] : memref<3x1xf32, #tpu.memory_space<vmem>>, vector<3x1xf32>
    %246 = vector.broadcast %245 : vector<3x1xf32> to vector<3x256xf32>
    %247 = arith.addf %244, %246 : vector<3x256xf32>
    %c0_96 = arith.constant 0 : index
    %c0_97 = arith.constant 0 : index
    %248 = vector.load %arg11[%c0_96, %c0_97] : memref<3x256xf32, #tpu.memory_space<vmem>>, vector<3x256xf32>
    tpu.vector_store %arg11[%c0_96, %c0_97], %247 {strides = array<i32>} : memref<3x256xf32, #tpu.memory_space<vmem>>, vector<3x256xf32>,
    return
  }
}

</mosaic_0001>

<llo_original>
// kernel: simple_cnn_forward.1
$region0: #{simple_cnn_forward.1}
  #allocation0 [shape = 'u32[]', space=smem, size = 0x4, offset = 0x4, fixed_abs, tag = 'smem constant byte address 0x4 - core index']
  #allocation1 [shape = 'u32[144,128]{1,0:T(1,128)}', space=vmem, size = 0x12000, scoped, tag = 'internal scratch']
  %s0 = inlined_call_operand.vmem [shape: f32[2,4,128], index: 0, kind: input, shape index: {}]
  %s1 = inlined_call_operand.vmem [shape: bf16[32,36], index: 1, kind: input, shape index: {}]
  %s2 = inlined_call_operand.vmem [shape: f32[32,1], index: 2, kind: input, shape index: {}]
  %s3 = inlined_call_operand.vmem [shape: f32[32,1], index: 3, kind: input, shape index: {}]
  %s4 = inlined_call_operand.vmem [shape: f32[32,1], index: 4, kind: input, shape index: {}]
  %s5 = inlined_call_operand.vmem [shape: bf16[16,288], index: 5, kind: input, shape index: {}]
  %s6 = inlined_call_operand.vmem [shape: f32[16,1], index: 6, kind: input, shape index: {}]
  %s7 = inlined_call_operand.vmem [shape: f32[16,1], index: 7, kind: input, shape index: {}]
  %s8 = inlined_call_operand.vmem [shape: f32[16,1], index: 8, kind: input, shape index: {}]
  %s9 = inlined_call_operand.vmem [shape: bf16[3,16], index: 9, kind: input, shape index: {}]
  %s10 = inlined_call_operand.vmem [shape: f32[3,1], index: 10, kind: input, shape index: {}]
  %s11 = inlined_call_operand.vmem [shape: f32[3,256], index: 11, kind: output, shape index: {}]
  %s12 = sld [smem:[#allocation0]]
  $region54: #{simple_cnn_forward.1} parent=0
    _
  %s14 = ssub.s32 1, %s12
  %s15 = scalar_select 0, %s14, %s12
  // Predicated region
  $region2: #{simple_cnn_forward.1} parent=0 // pred_check
    _
  $region3: #{simple_cnn_forward.1} parent=0 // pred_check_branch
    %17 = sbr.rel (0) target = $region5
  $region4: #{simple_cnn_forward.1} parent=0 // pred_region
    _
  $region5: #{simple_cnn_forward.1} parent=0 // pred_fallthru
    _
  // Predicated region
  $region6: #{simple_cnn_forward.1} parent=0 // pred_check
    _
  $region7: #{simple_cnn_forward.1} parent=0 // pred_check_branch
    %19 = sbr.rel (0) target = $region9
  $region8: #{simple_cnn_forward.1} parent=0 // pred_region
    _
  $region9: #{simple_cnn_forward.1} parent=0 // pred_fallthru
    _
  // Predicated region
  $region10: #{simple_cnn_forward.1} parent=0 // pred_check
    _
  $region11: #{simple_cnn_forward.1} parent=0 // pred_check_branch
    %21 = sbr.rel (0) target = $region13
  $region12: #{simple_cnn_forward.1} parent=0 // pred_region
    _
  $region13: #{simple_cnn_forward.1} parent=0 // pred_fallthru
    _
  // Predicated region
  $region14: #{simple_cnn_forward.1} parent=0 // pred_check
    _
  $region15: #{simple_cnn_forward.1} parent=0 // pred_check_branch
    %23 = sbr.rel (0) target = $region17
  $region16: #{simple_cnn_forward.1} parent=0 // pred_region
    _
  $region17: #{simple_cnn_forward.1} parent=0 // pred_fallthru
    _
  // Predicated region
  $region18: #{simple_cnn_forward.1} parent=0 // pred_check
    _
  $region19: #{simple_cnn_forward.1} parent=0 // pred_check_branch
    %25 = sbr.rel (0) target = $region21
  $region20: #{simple_cnn_forward.1} parent=0 // pred_region
    _
  $region21: #{simple_cnn_forward.1} parent=0 // pred_fallthru
    _
  // Predicated region
  $region22: #{simple_cnn_forward.1} parent=0 // pred_check
    _
  $region23: #{simple_cnn_forward.1} parent=0 // pred_check_branch
    %27 = sbr.rel (0) target = $region25
  $region24: #{simple_cnn_forward.1} parent=0 // pred_region
    _
  $region25: #{simple_cnn_forward.1} parent=0 // pred_fallthru
    _
  // Predicated region
  $region26: #{simple_cnn_forward.1} parent=0 // pred_check
    _
  $region27: #{simple_cnn_forward.1} parent=0 // pred_check_branch
    %29 = sbr.rel (0) target = $region29
  $region28: #{simple_cnn_forward.1} parent=0 // pred_region
    _
  $region29: #{simple_cnn_forward.1} parent=0 // pred_fallthru
    _
  // Predicated region
  $region30: #{simple_cnn_forward.1} parent=0 // pred_check
    _
  $region31: #{simple_cnn_forward.1} parent=0 // pred_check_branch
    %31 = sbr.rel (0) target = $region33
  $region32: #{simple_cnn_forward.1} parent=0 // pred_region
    _
  $region33: #{simple_cnn_forward.1} parent=0 // pred_fallthru
    _
  // Predicated region
  $region34: #{simple_cnn_forward.1} parent=0 // pred_check
    _
  $region35: #{simple_cnn_forward.1} parent=0 // pred_check_branch
    %33 = sbr.rel (0) target = $region37
  $region36: #{simple_cnn_forward.1} parent=0 // pred_region
    _
  $region37: #{simple_cnn_forward.1} parent=0 // pred_fallthru
    _
  // Predicated region
  $region38: #{simple_cnn_forward.1} parent=0 // pred_check
    _
  $region39: #{simple_cnn_forward.1} parent=0 // pred_check_branch
    %35 = sbr.rel (0) target = $region41
  $region40: #{simple_cnn_forward.1} parent=0 // pred_region
    _
  $region41: #{simple_cnn_forward.1} parent=0 // pred_fallthru
    _
  // Predicated region
  $region42: #{simple_cnn_forward.1} parent=0 // pred_check
    _
  $region43: #{simple_cnn_forward.1} parent=0 // pred_check_branch
    %37 = sbr.rel (0) target = $region45
  $region44: #{simple_cnn_forward.1} parent=0 // pred_region
    _
  $region45: #{simple_cnn_forward.1} parent=0 // pred_fallthru
    _
  %v39 = vld [vmem:[%s0] sm:$0xf]
  %s40 = scalar_lea.vmem %s0, 4
  %v41 = vld [vmem:[%s40] sm:$0xf]
  %v42 = vlaneseq
  %v43 = vand.u32 %v42, 127
  %v44 = vadd.s32 %v43, 128
  %vm45 = vcmp.lt.s32.totalorder %v43, 0
  %v46 = vsub.s32 0, %v43
  %v47 = vsel %vm45, %v46, %v43
  %v48 = vshrl.u32 %v47, 7
  %v49 = vand.u32 %v47, 127
  %v50 = vsub.s32 0, %v49
  %v51 = vsel %vm45, %v50, %v49
  %vm52 = vcmp.lt.s32.totalorder %v44, 0
  %v53 = vsub.s32 0, %v44
  %v54 = vsel %vm52, %v53, %v44
  %v55 = vshrl.u32 %v54, 7
  %v56 = vand.u32 %v54, 127
  %v57 = vsub.s32 0, %v56
  %v58 = vsel %vm52, %v57, %v56
  %vm59 = vcmp.ne.s32.totalorder %v51, 0
  %vm60 = vcmp.ne.s32.totalorder %v58, 0
  %vm61 = vcmp.lt.s32.totalorder %v51, 0
  %vm62 = vcmp.lt.s32.totalorder %v58, 0
  %vm63 = vmand %vm61, %vm59
  %vm64 = vmand %vm62, %vm60
  %v65 = vadd.s32 %v51, 128
  %v66 = vadd.s32 %v58, 128
  %v67 = vsel %vm63, %v65, %v51
  %v68 = vsel %vm64, %v66, %v58
  %v69 = vadd.s32 %v67, 4294967292
  %v70 = vadd.s32 %v68, 4294967292
  %vm71 = vcmp.ge.s32.totalorder %v69, 0
  %vm72 = vcmp.ge.s32.totalorder %v70, 0
  %vm73 = vcmp.lt.s32.totalorder %v69, 128
  %vm74 = vcmp.lt.s32.totalorder %v70, 128
  %vm75 = vmand %vm71, %vm73
  %vm76 = vmand %vm72, %vm74
  %v77 = vadd.s32 %v67, 4294967293
  %v78 = vadd.s32 %v68, 4294967293
  %vm79 = vcmp.ge.s32.totalorder %v77, 0
  %vm80 = vcmp.ge.s32.totalorder %v78, 0
  %vm81 = vcmp.lt.s32.totalorder %v77, 128
  %vm82 = vcmp.lt.s32.totalorder %v78, 128
  %vm83 = vmand %vm79, %vm81
  %vm84 = vmand %vm80, %vm82
  %v85 = vadd.s32 %v67, 4294967294
  %v86 = vadd.s32 %v68, 4294967294
  %vm87 = vcmp.ge.s32.totalorder %v85, 0
  %vm88 = vcmp.ge.s32.totalorder %v86, 0
  %vm89 = vcmp.lt.s32.totalorder %v85, 128
  %vm90 = vcmp.lt.s32.totalorder %v86, 128
  %vm91 = vmand %vm87, %vm89
  %vm92 = vmand %vm88, %vm90
  %v93 = vadd.s32 %v67, 4294967295
  %v94 = vadd.s32 %v68, 4294967295
  %vm95 = vcmp.ge.s32.totalorder %v93, 0
  %vm96 = vcmp.ge.s32.totalorder %v94, 0
  %vm97 = vcmp.lt.s32.totalorder %v93, 128
  %vm98 = vcmp.lt.s32.totalorder %v94, 128
  %vm99 = vmand %vm95, %vm97
  %vm100 = vmand %vm96, %vm98
  %v101 = vadd.s32 %v67, 1
  %v102 = vadd.s32 %v68, 1
  %vm103 = vcmp.ge.s32.totalorder %v101, 0
  %vm104 = vcmp.ge.s32.totalorder %v102, 0
  %vm105 = vcmp.lt.s32.totalorder %v101, 128
  %vm106 = vcmp.lt.s32.totalorder %v102, 128
  %vm107 = vmand %vm103, %vm105
  %vm108 = vmand %vm104, %vm106
  %v109 = vadd.s32 %v67, 2
  %v110 = vadd.s32 %v68, 2
  %vm111 = vcmp.ge.s32.totalorder %v109, 0
  %vm112 = vcmp.ge.s32.totalorder %v110, 0
  %vm113 = vcmp.lt.s32.totalorder %v109, 128
  %vm114 = vcmp.lt.s32.totalorder %v110, 128
  %vm115 = vmand %vm111, %vm113
  %vm116 = vmand %vm112, %vm114
  %v117 = vadd.s32 %v67, 3
  %v118 = vadd.s32 %v68, 3
  %vm119 = vcmp.ge.s32.totalorder %v117, 0
  %vm120 = vcmp.ge.s32.totalorder %v118, 0
  %vm121 = vcmp.lt.s32.totalorder %v117, 128
  %vm122 = vcmp.lt.s32.totalorder %v118, 128
  %vm123 = vmand %vm119, %vm121
  %vm124 = vmand %vm120, %vm122
  %v125 = vadd.s32 %v67, 4
  %v126 = vadd.s32 %v68, 4
  %vm127 = vcmp.ge.s32.totalorder %v125, 0
  %vm128 = vcmp.ge.s32.totalorder %v126, 0
  %vm129 = vcmp.lt.s32.totalorder %v125, 128
  %vm130 = vcmp.lt.s32.totalorder %v126, 128
  %vm131 = vmand %vm127, %vm129
  %vm132 = vmand %vm128, %vm130
  %v133 = vld [vmem:[%s1] sm:$0xf]
  %v134 = vld [vmem:[%s1 + $0x4] sm:$0xf]
  %v135 = vld [vmem:[%s1 + $0x8] sm:$0xf]
  %v136 = vld [vmem:[%s1 + $0xc] sm:$0xf]
  %137 = vrot.lane.b32.xlu0 %v39, 4
  %v138 = vpop.permute.xlu0 %137
  %139 = vrot.lane.b32.xlu0 %v41, 4
  %v140 = vpop.permute.xlu0 %139
  %vm141 = vcmp.lt.s32.totalorder %v43, 4
  %v142 = vsel %vm141, %v138, %v140
  %v143 = vsel %vm141, %v140, %v138
  %v144 = vsel %vm75, 1, 0
  %v145 = vsel %vm76, 1, 0
  %vm146 = vcmp.eq.s32.totalorder %v144, 1
  %vm147 = vcmp.eq.s32.totalorder %v145, 1
  %v148 = vsel %vm146, %v143, 0.0
  %v149 = vsel %vm147, %v142, 0.0
  %150 = vrot.lane.b32.xlu0 %v39, 3
  %v151 = vpop.permute.xlu0 %150
  %152 = vrot.lane.b32.xlu0 %v41, 3
  %v153 = vpop.permute.xlu0 %152
  %vm154 = vcmp.lt.s32.totalorder %v43, 3
  %v155 = vsel %vm154, %v151, %v153
  %v156 = vsel %vm154, %v153, %v151
  %v157 = vsel %vm83, 1, 0
  %v158 = vsel %vm84, 1, 0
  %vm159 = vcmp.eq.s32.totalorder %v157, 1
  %vm160 = vcmp.eq.s32.totalorder %v158, 1
  %v161 = vsel %vm159, %v156, 0.0
  %v162 = vsel %vm160, %v155, 0.0
  %163 = vrot.lane.b32.xlu0 %v39, 2
  %v164 = vpop.permute.xlu0 %163
  %165 = vrot.lane.b32.xlu0 %v41, 2
  %v166 = vpop.permute.xlu0 %165
  %vm167 = vcmp.lt.s32.totalorder %v43, 2
  %v168 = vsel %vm167, %v164, %v166
  %v169 = vsel %vm167, %v166, %v164
  %v170 = vsel %vm91, 1, 0
  %v171 = vsel %vm92, 1, 0
  %vm172 = vcmp.eq.s32.totalorder %v170, 1
  %vm173 = vcmp.eq.s32.totalorder %v171, 1
  %v174 = vsel %vm172, %v169, 0.0
  %v175 = vsel %vm173, %v168, 0.0
  %176 = vrot.lane.b32.xlu0 %v39, 1
  %v177 = vpop.permute.xlu0 %176
  %178 = vrot.lane.b32.xlu0 %v41, 1
  %v179 = vpop.permute.xlu0 %178
  %vm180 = vcmp.lt.s32.totalorder %v43, 1
  %v181 = vsel %vm180, %v177, %v179
  %v182 = vsel %vm180, %v179, %v177
  %v183 = vsel %vm99, 1, 0
  %v184 = vsel %vm100, 1, 0
  %vm185 = vcmp.eq.s32.totalorder %v183, 1
  %vm186 = vcmp.eq.s32.totalorder %v184, 1
  %v187 = vsel %vm185, %v182, 0.0
  %v188 = vsel %vm186, %v181, 0.0
  %189 = vrot.lane.b32.xlu0 %v39, 127
  %v190 = vpop.permute.xlu0 %189
  %191 = vrot.lane.b32.xlu0 %v41, 127
  %v192 = vpop.permute.xlu0 %191
  %vm193 = vcmp.lt.s32.totalorder %v43, 127
  %v194 = vsel %vm193, %v190, %v192
  %v195 = vsel %vm193, %v192, %v190
  %v196 = vsel %vm107, 1, 0
  %v197 = vsel %vm108, 1, 0
  %vm198 = vcmp.eq.s32.totalorder %v196, 1
  %vm199 = vcmp.eq.s32.totalorder %v197, 1
  %v200 = vsel %vm198, %v194, 0.0
  %v201 = vsel %vm199, %v195, 0.0
  %202 = vrot.lane.b32.xlu0 %v39, 126
  %v203 = vpop.permute.xlu0 %202
  %204 = vrot.lane.b32.xlu0 %v41, 126
  %v205 = vpop.permute.xlu0 %204
  %vm206 = vcmp.lt.s32.totalorder %v43, 126
  %v207 = vsel %vm206, %v203, %v205
  %v208 = vsel %vm206, %v205, %v203
  %v209 = vsel %vm115, 1, 0
  %v210 = vsel %vm116, 1, 0
  %vm211 = vcmp.eq.s32.totalorder %v209, 1
  %vm212 = vcmp.eq.s32.totalorder %v210, 1
  %v213 = vsel %vm211, %v207, 0.0
  %v214 = vsel %vm212, %v208, 0.0
  %215 = vrot.lane.b32.xlu0 %v39, 125
  %v216 = vpop.permute.xlu0 %215
  %217 = vrot.lane.b32.xlu0 %v41, 125
  %v218 = vpop.permute.xlu0 %217
  %vm219 = vcmp.lt.s32.totalorder %v43, 125
  %v220 = vsel %vm219, %v216, %v218
  %v221 = vsel %vm219, %v218, %v216
  %v222 = vsel %vm123, 1, 0
  %v223 = vsel %vm124, 1, 0
  %vm224 = vcmp.eq.s32.totalorder %v222, 1
  %vm225 = vcmp.eq.s32.totalorder %v223, 1
  %v226 = vsel %vm224, %v220, 0.0
  %v227 = vsel %vm225, %v221, 0.0
  %228 = vrot.lane.b32.xlu0 %v39, 124
  %v229 = vpop.permute.xlu0 %228
  %230 = vrot.lane.b32.xlu0 %v41, 124
  %v231 = vpop.permute.xlu0 %230
  %vm232 = vcmp.lt.s32.totalorder %v43, 124
  %v233 = vsel %vm232, %v229, %v231
  %v234 = vsel %vm232, %v231, %v229
  %v235 = vsel %vm131, 1, 0
  %v236 = vsel %vm132, 1, 0
  %vm237 = vcmp.eq.s32.totalorder %v235, 1
  %vm238 = vcmp.eq.s32.totalorder %v236, 1
  %v239 = vsel %vm237, %v233, 0.0
  %v240 = vsel %vm238, %v234, 0.0
  %v243 = vrot.slane %v161, 4
  %v244 = vrot.slane %v162, 4
  %v249 = vrot.slane %v187, 4
  %v250 = vrot.slane %v188, 4
  %v255 = vrot.slane %v200, 4
  %v256 = vrot.slane %v201, 4
  %v261 = vrot.slane %v226, 4
  %v262 = vrot.slane %v227, 4
  %vm265 = vcmask 1043456
  %v266 = vsel %vm265, %v148, %v243
  %v267 = vsel %vm265, %v149, %v244
  %v268 = vsel %vm265, %v174, %v249
  %v269 = vsel %vm265, %v175, %v250
  %v270 = vsel %vm265, %v39, %v255
  %v271 = vsel %vm265, %v41, %v256
  %v272 = vsel %vm265, %v213, %v261
  %v273 = vsel %vm265, %v214, %v262
  %v274 = vpack.c.bf16 %v268, %v266
  %v275 = vpack.c.bf16 %v269, %v267
  %v276 = vpack.c.bf16 %v272, %v270
  %v277 = vpack.c.bf16 %v273, %v271
  %v278 = vpack.c.bf16 %v239, %v239
  %v279 = vpack.c.bf16 %v240, %v240
  %v280 = vld [vmem:[%s2] sm:$0xff]
  %v281 = vld [vmem:[%s2 + $0x8] sm:$0xff]
  %v282 = vld [vmem:[%s2 + $0x10] sm:$0xff]
  %v283 = vld [vmem:[%s2 + $0x18] sm:$0xff]
  %285 = vset.pattern.permute.xlu0 0
  %286 = vperm.xlu0 %285, %v280
  %v287 = vpop.permute.xlu0 %286
  %290 = vset.pattern.permute.xlu0 0
  %291 = vperm.xlu0 %290, %v281
  %v292 = vpop.permute.xlu0 %291
  %295 = vset.pattern.permute.xlu0 0
  %296 = vperm.xlu0 %295, %v282
  %v297 = vpop.permute.xlu0 %296
  %300 = vset.pattern.permute.xlu0 0
  %301 = vperm.xlu0 %300, %v283
  %v302 = vpop.permute.xlu0 %301
  %v308 = vunpack.c.l.b16 %v133
  %v309 = vunpack.c.l.b16 %v134
  %v310 = vunpack.c.l.b16 %v135
  %v311 = vunpack.c.l.b16 %v136
  %v312 = vpack.c.b16 %v309, %v308
  %v313 = vpack.c.b16 %v311, %v310
  %vm314 = vcmask 293888
  %v316 = vsel %vm314, %v312, 0
  %v319 = vsel %vm314, %v313, 0
  %vm321 = vcmask 1041408
  %v323 = vsel %vm321, %v278, 0
  %v326 = vsel %vm321, %v279, 0
  %328 = vmatprep.subr.bf16.mxu0 %v275
  %329 = vmatpush1.bf16.msra.mxu0 %v274
  %330 = vmatprep.subr.bf16.mxu0 %v277
  %331 = vmatpush1.bf16.msra.mxu0 %v276
  %332 = vmatprep.subr.bf16.mxu0 %v326
  %333 = vmatpush1.bf16.msra.mxu0 %v323
  %334 = vmatprep.subr.bf16.mxu0 0
  %335 = vmatpush1.bf16.msra.mxu0 0
  %336 = vmatprep.subr.bf16.mxu0 0
  %337 = vmatpush1.bf16.msra.mxu0 0
  %338 = vmatprep.subr.bf16.mxu0 0
  %339 = vmatpush1.bf16.msra.mxu0 0
  %340 = vmatprep.subr.bf16.mxu0 0
  %341 = vmatpush1.bf16.msra.mxu0 0
  %342 = vmatprep.subr.bf16.mxu0 0
  %343 = vmatpush1.bf16.msra.mxu0 0
  %344 = vmatprep.subr.bf16.mxu0 0
  %345 = vmatpush1.bf16.msra.mxu0 0
  %346 = vmatprep.subr.bf16.mxu0 0
  %347 = vmatpush1.bf16.msra.mxu0 0
  %348 = vmatprep.subr.bf16.mxu0 0
  %349 = vmatpush1.bf16.msra.mxu0 0
  %350 = vmatprep.subr.bf16.mxu0 0
  %351 = vmatpush1.bf16.msra.mxu0 0
  %352 = vmatprep.subr.bf16.mxu0 0
  %353 = vmatpush1.bf16.msra.mxu0 0
  %354 = vmatprep.subr.bf16.mxu0 0
  %355 = vmatpush1.bf16.msra.mxu0 0
  %356 = vmatprep.subr.bf16.mxu0 0
  %357 = vmatpush1.bf16.msra.mxu0 0
  %358 = vmatprep.subr.bf16.mxu0 0
  %359 = vmatpush1.bf16.msra.mxu0 0
  %360 = vmatprep.mubr.bf16.mxu0 0
  %361 = vmatmul.mubr.bf16.gmra.mrb[0].mxu0 %v316
  %v362 = vpop.f32.mrb[0].mxu0
  %v363 = vadd.f32 %v287, %v362
  %v364 = vpop.f32.mrb[0].mxu0
  %v365 = vadd.f32 %v287, %v364
  %v366 = vpop.f32.mrb[0].mxu0
  %v367 = vadd.f32 %v292, %v366
  %v368 = vpop.f32.mrb[0].mxu0
  %v369 = vadd.f32 %v292, %v368
  %370 = vmatprep.mubr.bf16.mxu0 0
  %371 = vmatmul.mubr.bf16.gmra.mrb[0].mxu0 %v319
  %v372 = vpop.f32.mrb[0].mxu0
  %v373 = vadd.f32 %v297, %v372
  %v374 = vpop.f32.mrb[0].mxu0
  %v375 = vadd.f32 %v297, %v374
  %v376 = vpop.f32.mrb[0].mxu0
  %v377 = vadd.f32 %v302, %v376
  %v378 = vpop.f32.mrb[0].mxu0
  %v379 = vadd.f32 %v302, %v378
  %380 = vdwg.mxu0
  %v381 = vld [vmem:[%s3] sm:$0xff]
  %v382 = vld [vmem:[%s3 + $0x8] sm:$0xff]
  %v383 = vld [vmem:[%s3 + $0x10] sm:$0xff]
  %v384 = vld [vmem:[%s3 + $0x18] sm:$0xff]
  %v385 = vld [vmem:[%s4] sm:$0xff]
  %v386 = vld [vmem:[%s4 + $0x8] sm:$0xff]
  %v387 = vld [vmem:[%s4 + $0x10] sm:$0xff]
  %v388 = vld [vmem:[%s4 + $0x18] sm:$0xff]
  %v389 = vadd.f32 %v363, %v365
  %390 = vadd.xlane.f32.xlu0 %v389
  %v391 = vpop.xlane.xlu0 %390
  %v392 = vadd.f32 %v367, %v369
  %393 = vadd.xlane.f32.xlu0 %v392
  %v394 = vpop.xlane.xlu0 %393
  %v395 = vadd.f32 %v373, %v375
  %396 = vadd.xlane.f32.xlu0 %v395
  %v397 = vpop.xlane.xlu0 %396
  %v398 = vadd.f32 %v377, %v379
  %399 = vadd.xlane.f32.xlu0 %v398
  %v400 = vpop.xlane.xlu0 %399
  %v401 = vmul.f32 %v391, 0.00390625
  %v402 = vmul.f32 %v394, 0.00390625
  %v403 = vmul.f32 %v397, 0.00390625
  %v404 = vmul.f32 %v400, 0.00390625
  %v405 = vmul.f32 %v363, %v363
  %v406 = vmul.f32 %v365, %v365
  %v407 = vmul.f32 %v367, %v367
  %v408 = vmul.f32 %v369, %v369
  %v409 = vmul.f32 %v373, %v373
  %v410 = vmul.f32 %v375, %v375
  %v411 = vmul.f32 %v377, %v377
  %v412 = vmul.f32 %v379, %v379
  %v413 = vadd.f32 %v405, %v406
  %414 = vadd.xlane.f32.xlu0 %v413
  %v415 = vpop.xlane.xlu0 %414
  %v416 = vadd.f32 %v407, %v408
  %417 = vadd.xlane.f32.xlu0 %v416
  %v418 = vpop.xlane.xlu0 %417
  %v419 = vadd.f32 %v409, %v410
  %420 = vadd.xlane.f32.xlu0 %v419
  %v421 = vpop.xlane.xlu0 %420
  %v422 = vadd.f32 %v411, %v412
  %423 = vadd.xlane.f32.xlu0 %v422
  %v424 = vpop.xlane.xlu0 %423
  %v425 = vmul.f32 %v415, 0.00390625
  %v426 = vmul.f32 %v418, 0.00390625
  %v427 = vmul.f32 %v421, 0.00390625
  %v428 = vmul.f32 %v424, 0.00390625
  %v429 = vmul.f32 %v401, %v401
  %v430 = vmul.f32 %v402, %v402
  %v431 = vmul.f32 %v403, %v403
  %v432 = vmul.f32 %v404, %v404
  %v433 = vsub.f32 %v425, %v429
  %v434 = vsub.f32 %v426, %v430
  %v435 = vsub.f32 %v427, %v431
  %v436 = vsub.f32 %v428, %v432
  %v437 = vmax.f32 %v433, 0.0
  %v438 = vmax.f32 %v434, 0.0
  %v439 = vmax.f32 %v435, 0.0
  %v440 = vmax.f32 %v436, 0.0
  %v441 = vadd.f32 %v437, 1e-05
  %v442 = vadd.f32 %v438, 1e-05
  %v443 = vadd.f32 %v439, 1e-05
  %v444 = vadd.f32 %v440, 1e-05
  %v445 = vrsqrt.pop %v441
  %v446 = vrsqrt.pop %v442
  %v447 = vrsqrt.pop %v443
  %v448 = vrsqrt.pop %v444
  %v449 = vmul.f32 %v381, %v445
  %v450 = vmul.f32 %v382, %v446
  %v451 = vmul.f32 %v383, %v447
  %v452 = vmul.f32 %v384, %v448
  %v453 = vmul.f32 %v401, %v449
  %v454 = vmul.f32 %v402, %v450
  %v455 = vmul.f32 %v403, %v451
  %v456 = vmul.f32 %v404, %v452
  %v457 = vsub.f32 %v385, %v453
  %v458 = vsub.f32 %v386, %v454
  %v459 = vsub.f32 %v387, %v455
  %v460 = vsub.f32 %v388, %v456
  %462 = vset.pattern.permute.xlu0 0
  %463 = vperm.xlu0 %462, %v449
  %v464 = vpop.permute.xlu0 %463
  %467 = vset.pattern.permute.xlu0 0
  %468 = vperm.xlu0 %467, %v450
  %v469 = vpop.permute.xlu0 %468
  %472 = vset.pattern.permute.xlu0 0
  %473 = vperm.xlu0 %472, %v451
  %v474 = vpop.permute.xlu0 %473
  %477 = vset.pattern.permute.xlu0 0
  %478 = vperm.xlu0 %477, %v452
  %v479 = vpop.permute.xlu0 %478
  %v481 = vmul.f32 %v363, %v464
  %v482 = vmul.f32 %v365, %v464
  %v483 = vmul.f32 %v367, %v469
  %v484 = vmul.f32 %v369, %v469
  %v485 = vmul.f32 %v373, %v474
  %v486 = vmul.f32 %v375, %v474
  %v487 = vmul.f32 %v377, %v479
  %v488 = vmul.f32 %v379, %v479
  %490 = vset.pattern.permute.xlu0 0
  %491 = vperm.xlu0 %490, %v457
  %v492 = vpop.permute.xlu0 %491
  %495 = vset.pattern.permute.xlu0 0
  %496 = vperm.xlu0 %495, %v458
  %v497 = vpop.permute.xlu0 %496
  %500 = vset.pattern.permute.xlu0 0
  %501 = vperm.xlu0 %500, %v459
  %v502 = vpop.permute.xlu0 %501
  %505 = vset.pattern.permute.xlu0 0
  %506 = vperm.xlu0 %505, %v460
  %v507 = vpop.permute.xlu0 %506
  %v509 = vadd.f32 %v481, %v492
  %v510 = vadd.f32 %v482, %v492
  %v511 = vadd.f32 %v483, %v497
  %v512 = vadd.f32 %v484, %v497
  %v513 = vadd.f32 %v485, %v502
  %v514 = vadd.f32 %v486, %v502
  %v515 = vadd.f32 %v487, %v507
  %v516 = vadd.f32 %v488, %v507
  %v517 = vmax.f32 %v509, 0.0
  %v518 = vmax.f32 %v510, 0.0
  %v519 = vmax.f32 %v511, 0.0
  %v520 = vmax.f32 %v512, 0.0
  %v521 = vmax.f32 %v513, 0.0
  %v522 = vmax.f32 %v514, 0.0
  %v523 = vmax.f32 %v515, 0.0
  %v524 = vmax.f32 %v516, 0.0
  %v525 = vld [vmem:[%s5] sm:$0xff]
  %v526 = vld [vmem:[%s5 + $0x8] sm:$0xf]
  %v527 = vld [vmem:[%s5 + $0xc] sm:$0xff]
  %v528 = vld [vmem:[%s5 + $0x14] sm:$0xf]
  %529 = vrot.lane.b32.xlu0 %v517, 4
  %v530 = vpop.permute.xlu0 %529
  %531 = vrot.lane.b32.xlu0 %v519, 4
  %v532 = vpop.permute.xlu0 %531
  %533 = vrot.lane.b32.xlu0 %v521, 4
  %v534 = vpop.permute.xlu0 %533
  %535 = vrot.lane.b32.xlu0 %v523, 4
  %v536 = vpop.permute.xlu0 %535
  %537 = vrot.lane.b32.xlu0 %v518, 4
  %v538 = vpop.permute.xlu0 %537
  %539 = vrot.lane.b32.xlu0 %v520, 4
  %v540 = vpop.permute.xlu0 %539
  %541 = vrot.lane.b32.xlu0 %v522, 4
  %v542 = vpop.permute.xlu0 %541
  %543 = vrot.lane.b32.xlu0 %v524, 4
  %v544 = vpop.permute.xlu0 %543
  %v545 = vsel %vm141, %v530, %v538
  %v546 = vsel %vm141, %v532, %v540
  %v547 = vsel %vm141, %v534, %v542
  %v548 = vsel %vm141, %v536, %v544
  %v549 = vsel %vm141, %v538, %v530
  %v550 = vsel %vm141, %v540, %v532
  %v551 = vsel %vm141, %v542, %v534
  %v552 = vsel %vm141, %v544, %v536
  %v553 = vsel %vm146, %v549, 0.0
  %v554 = vsel %vm147, %v545, 0.0
  %v555 = vsel %vm146, %v550, 0.0
  %v556 = vsel %vm147, %v546, 0.0
  %v557 = vsel %vm146, %v551, 0.0
  %v558 = vsel %vm147, %v547, 0.0
  %v559 = vsel %vm146, %v552, 0.0
  %v560 = vsel %vm147, %v548, 0.0
  %561 = vrot.lane.b32.xlu0 %v517, 3
  %v562 = vpop.permute.xlu0 %561
  %563 = vrot.lane.b32.xlu0 %v519, 3
  %v564 = vpop.permute.xlu0 %563
  %565 = vrot.lane.b32.xlu0 %v521, 3
  %v566 = vpop.permute.xlu0 %565
  %567 = vrot.lane.b32.xlu0 %v523, 3
  %v568 = vpop.permute.xlu0 %567
  %569 = vrot.lane.b32.xlu0 %v518, 3
  %v570 = vpop.permute.xlu0 %569
  %571 = vrot.lane.b32.xlu0 %v520, 3
  %v572 = vpop.permute.xlu0 %571
  %573 = vrot.lane.b32.xlu0 %v522, 3
  %v574 = vpop.permute.xlu0 %573
  %575 = vrot.lane.b32.xlu0 %v524, 3
  %v576 = vpop.permute.xlu0 %575
  %v577 = vsel %vm154, %v562, %v570
  %v578 = vsel %vm154, %v564, %v572
  %v579 = vsel %vm154, %v566, %v574
  %v580 = vsel %vm154, %v568, %v576
  %v581 = vsel %vm154, %v570, %v562
  %v582 = vsel %vm154, %v572, %v564
  %v583 = vsel %vm154, %v574, %v566
  %v584 = vsel %vm154, %v576, %v568
  %v585 = vsel %vm159, %v581, 0.0
  %v586 = vsel %vm160, %v577, 0.0
  %v587 = vsel %vm159, %v582, 0.0
  %v588 = vsel %vm160, %v578, 0.0
  %v589 = vsel %vm159, %v583, 0.0
  %v590 = vsel %vm160, %v579, 0.0
  %v591 = vsel %vm159, %v584, 0.0
  %v592 = vsel %vm160, %v580, 0.0
  %593 = vrot.lane.b32.xlu0 %v517, 2
  %v594 = vpop.permute.xlu0 %593
  %595 = vrot.lane.b32.xlu0 %v519, 2
  %v596 = vpop.permute.xlu0 %595
  %597 = vrot.lane.b32.xlu0 %v521, 2
  %v598 = vpop.permute.xlu0 %597
  %599 = vrot.lane.b32.xlu0 %v523, 2
  %v600 = vpop.permute.xlu0 %599
  %601 = vrot.lane.b32.xlu0 %v518, 2
  %v602 = vpop.permute.xlu0 %601
  %603 = vrot.lane.b32.xlu0 %v520, 2
  %v604 = vpop.permute.xlu0 %603
  %605 = vrot.lane.b32.xlu0 %v522, 2
  %v606 = vpop.permute.xlu0 %605
  %607 = vrot.lane.b32.xlu0 %v524, 2
  %v608 = vpop.permute.xlu0 %607
  %v609 = vsel %vm167, %v594, %v602
  %v610 = vsel %vm167, %v596, %v604
  %v611 = vsel %vm167, %v598, %v606
  %v612 = vsel %vm167, %v600, %v608
  %v613 = vsel %vm167, %v602, %v594
  %v614 = vsel %vm167, %v604, %v596
  %v615 = vsel %vm167, %v606, %v598
  %v616 = vsel %vm167, %v608, %v600
  %v617 = vsel %vm172, %v613, 0.0
  %v618 = vsel %vm173, %v609, 0.0
  %v619 = vsel %vm172, %v614, 0.0
  %v620 = vsel %vm173, %v610, 0.0
  %v621 = vsel %vm172, %v615, 0.0
  %v622 = vsel %vm173, %v611, 0.0
  %v623 = vsel %vm172, %v616, 0.0
  %v624 = vsel %vm173, %v612, 0.0
  %625 = vrot.lane.b32.xlu0 %v517, 1
  %v626 = vpop.permute.xlu0 %625
  %627 = vrot.lane.b32.xlu0 %v519, 1
  %v628 = vpop.permute.xlu0 %627
  %629 = vrot.lane.b32.xlu0 %v521, 1
  %v630 = vpop.permute.xlu0 %629
  %631 = vrot.lane.b32.xlu0 %v523, 1
  %v632 = vpop.permute.xlu0 %631
  %633 = vrot.lane.b32.xlu0 %v518, 1
  %v634 = vpop.permute.xlu0 %633
  %635 = vrot.lane.b32.xlu0 %v520, 1
  %v636 = vpop.permute.xlu0 %635
  %637 = vrot.lane.b32.xlu0 %v522, 1
  %v638 = vpop.permute.xlu0 %637
  %639 = vrot.lane.b32.xlu0 %v524, 1
  %v640 = vpop.permute.xlu0 %639
  %v641 = vsel %vm180, %v626, %v634
  %v642 = vsel %vm180, %v628, %v636
  %v643 = vsel %vm180, %v630, %v638
  %v644 = vsel %vm180, %v632, %v640
  %v645 = vsel %vm180, %v634, %v626
  %v646 = vsel %vm180, %v636, %v628
  %v647 = vsel %vm180, %v638, %v630
  %v648 = vsel %vm180, %v640, %v632
  %v649 = vsel %vm185, %v645, 0.0
  %v650 = vsel %vm186, %v641, 0.0
  %v651 = vsel %vm185, %v646, 0.0
  %v652 = vsel %vm186, %v642, 0.0
  %v653 = vsel %vm185, %v647, 0.0
  %v654 = vsel %vm186, %v643, 0.0
  %v655 = vsel %vm185, %v648, 0.0
  %v656 = vsel %vm186, %v644, 0.0
  %657 = vrot.lane.b32.xlu0 %v517, 127
  %v658 = vpop.permute.xlu0 %657
  %659 = vrot.lane.b32.xlu0 %v519, 127
  %v660 = vpop.permute.xlu0 %659
  %661 = vrot.lane.b32.xlu0 %v521, 127
  %v662 = vpop.permute.xlu0 %661
  %663 = vrot.lane.b32.xlu0 %v523, 127
  %v664 = vpop.permute.xlu0 %663
  %665 = vrot.lane.b32.xlu0 %v518, 127
  %v666 = vpop.permute.xlu0 %665
  %667 = vrot.lane.b32.xlu0 %v520, 127
  %v668 = vpop.permute.xlu0 %667
  %669 = vrot.lane.b32.xlu0 %v522, 127
  %v670 = vpop.permute.xlu0 %669
  %671 = vrot.lane.b32.xlu0 %v524, 127
  %v672 = vpop.permute.xlu0 %671
  %v673 = vsel %vm193, %v658, %v666
  %v674 = vsel %vm193, %v660, %v668
  %v675 = vsel %vm193, %v662, %v670
  %v676 = vsel %vm193, %v664, %v672
  %v677 = vsel %vm193, %v666, %v658
  %v678 = vsel %vm193, %v668, %v660
  %v679 = vsel %vm193, %v670, %v662
  %v680 = vsel %vm193, %v672, %v664
  %v681 = vsel %vm198, %v673, 0.0
  %v682 = vsel %vm199, %v677, 0.0
  %v683 = vsel %vm198, %v674, 0.0
  %v684 = vsel %vm199, %v678, 0.0
  %v685 = vsel %vm198, %v675, 0.0
  %v686 = vsel %vm199, %v679, 0.0
  %v687 = vsel %vm198, %v676, 0.0
  %v688 = vsel %vm199, %v680, 0.0
  %689 = vrot.lane.b32.xlu0 %v517, 126
  %v690 = vpop.permute.xlu0 %689
  %691 = vrot.lane.b32.xlu0 %v519, 126
  %v692 = vpop.permute.xlu0 %691
  %693 = vrot.lane.b32.xlu0 %v521, 126
  %v694 = vpop.permute.xlu0 %693
  %695 = vrot.lane.b32.xlu0 %v523, 126
  %v696 = vpop.permute.xlu0 %695
  %697 = vrot.lane.b32.xlu0 %v518, 126
  %v698 = vpop.permute.xlu0 %697
  %699 = vrot.lane.b32.xlu0 %v520, 126
  %v700 = vpop.permute.xlu0 %699
  %701 = vrot.lane.b32.xlu0 %v522, 126
  %v702 = vpop.permute.xlu0 %701
  %703 = vrot.lane.b32.xlu0 %v524, 126
  %v704 = vpop.permute.xlu0 %703
  %v705 = vsel %vm206, %v690, %v698
  %v706 = vsel %vm206, %v692, %v700
  %v707 = vsel %vm206, %v694, %v702
  %v708 = vsel %vm206, %v696, %v704
  %v709 = vsel %vm206, %v698, %v690
  %v710 = vsel %vm206, %v700, %v692
  %v711 = vsel %vm206, %v702, %v694
  %v712 = vsel %vm206, %v704, %v696
  %v713 = vsel %vm211, %v705, 0.0
  %v714 = vsel %vm212, %v709, 0.0
  %v715 = vsel %vm211, %v706, 0.0
  %v716 = vsel %vm212, %v710, 0.0
  %v717 = vsel %vm211, %v707, 0.0
  %v718 = vsel %vm212, %v711, 0.0
  %v719 = vsel %vm211, %v708, 0.0
  %v720 = vsel %vm212, %v712, 0.0
  %721 = vrot.lane.b32.xlu0 %v517, 125
  %v722 = vpop.permute.xlu0 %721
  %723 = vrot.lane.b32.xlu0 %v519, 125
  %v724 = vpop.permute.xlu0 %723
  %725 = vrot.lane.b32.xlu0 %v521, 125
  %v726 = vpop.permute.xlu0 %725
  %727 = vrot.lane.b32.xlu0 %v523, 125
  %v728 = vpop.permute.xlu0 %727
  %729 = vrot.lane.b32.xlu0 %v518, 125
  %v730 = vpop.permute.xlu0 %729
  %731 = vrot.lane.b32.xlu0 %v520, 125
  %v732 = vpop.permute.xlu0 %731
  %733 = vrot.lane.b32.xlu0 %v522, 125
  %v734 = vpop.permute.xlu0 %733
  %735 = vrot.lane.b32.xlu0 %v524, 125
  %v736 = vpop.permute.xlu0 %735
  %v737 = vsel %vm219, %v722, %v730
  %v738 = vsel %vm219, %v724, %v732
  %v739 = vsel %vm219, %v726, %v734
  %v740 = vsel %vm219, %v728, %v736
  %v741 = vsel %vm219, %v730, %v722
  %v742 = vsel %vm219, %v732, %v724
  %v743 = vsel %vm219, %v734, %v726
  %v744 = vsel %vm219, %v736, %v728
  %v745 = vsel %vm224, %v737, 0.0
  %v746 = vsel %vm225, %v741, 0.0
  %v747 = vsel %vm224, %v738, 0.0
  %v748 = vsel %vm225, %v742, 0.0
  %v749 = vsel %vm224, %v739, 0.0
  %v750 = vsel %vm225, %v743, 0.0
  %v751 = vsel %vm224, %v740, 0.0
  %v752 = vsel %vm225, %v744, 0.0
  %753 = vrot.lane.b32.xlu0 %v517, 124
  %v754 = vpop.permute.xlu0 %753
  %755 = vrot.lane.b32.xlu0 %v519, 124
  %v756 = vpop.permute.xlu0 %755
  %757 = vrot.lane.b32.xlu0 %v521, 124
  %v758 = vpop.permute.xlu0 %757
  %759 = vrot.lane.b32.xlu0 %v523, 124
  %v760 = vpop.permute.xlu0 %759
  %761 = vrot.lane.b32.xlu0 %v518, 124
  %v762 = vpop.permute.xlu0 %761
  %763 = vrot.lane.b32.xlu0 %v520, 124
  %v764 = vpop.permute.xlu0 %763
  %765 = vrot.lane.b32.xlu0 %v522, 124
  %v766 = vpop.permute.xlu0 %765
  %767 = vrot.lane.b32.xlu0 %v524, 124
  %v768 = vpop.permute.xlu0 %767
  %v769 = vsel %vm232, %v754, %v762
  %v770 = vsel %vm232, %v756, %v764
  %v771 = vsel %vm232, %v758, %v766
  %v772 = vsel %vm232, %v760, %v768
  %v773 = vsel %vm232, %v762, %v754
  %v774 = vsel %vm232, %v764, %v756
  %v775 = vsel %vm232, %v766, %v758
  %v776 = vsel %vm232, %v768, %v760
  %v777 = vsel %vm237, %v769, 0.0
  %v778 = vsel %vm238, %v773, 0.0
  %v779 = vsel %vm237, %v770, 0.0
  %v780 = vsel %vm238, %v774, 0.0
  %v781 = vsel %vm237, %v771, 0.0
  %v782 = vsel %vm238, %v775, 0.0
  %v783 = vsel %vm237, %v772, 0.0
  %v784 = vsel %vm238, %v776, 0.0
  %v785 = vpack.c.bf16 %v555, %v553
  %v786 = vpack.c.bf16 %v556, %v554
  %v787 = vpack.c.bf16 %v559, %v557
  %v788 = vpack.c.bf16 %v560, %v558
  %v789 = vpack.c.bf16 %v587, %v585
  %v790 = vpack.c.bf16 %v588, %v586
  %v791 = vpack.c.bf16 %v591, %v589
  %v792 = vpack.c.bf16 %v592, %v590
  %v793 = vpack.c.bf16 %v619, %v617
  %v794 = vpack.c.bf16 %v620, %v618
  %v795 = vpack.c.bf16 %v623, %v621
  %v796 = vpack.c.bf16 %v624, %v622
  %v797 = vpack.c.bf16 %v651, %v649
  %v798 = vpack.c.bf16 %v652, %v650
  %v799 = vpack.c.bf16 %v655, %v653
  %v800 = vpack.c.bf16 %v656, %v654
  %v801 = vpack.c.bf16 %v519, %v517
  %v802 = vpack.c.bf16 %v520, %v518
  %v803 = vpack.c.bf16 %v523, %v521
  %v804 = vpack.c.bf16 %v524, %v522
  %v805 = vpack.c.bf16 %v683, %v681
  %v806 = vpack.c.bf16 %v684, %v682
  %v807 = vpack.c.bf16 %v687, %v685
  %v808 = vpack.c.bf16 %v688, %v686
  %v809 = vpack.c.bf16 %v715, %v713
  %v810 = vpack.c.bf16 %v716, %v714
  %v811 = vpack.c.bf16 %v719, %v717
  %v812 = vpack.c.bf16 %v720, %v718
  %v813 = vpack.c.bf16 %v747, %v745
  %v814 = vpack.c.bf16 %v748, %v746
  %v815 = vpack.c.bf16 %v751, %v749
  %v816 = vpack.c.bf16 %v752, %v750
  %v817 = vpack.c.bf16 %v779, %v777
  %v818 = vpack.c.bf16 %v780, %v778
  %v819 = vpack.c.bf16 %v783, %v781
  %v820 = vpack.c.bf16 %v784, %v782
  %v821 = vld [vmem:[%s6] sm:$0xff]
  %v822 = vld [vmem:[%s6 + $0x8] sm:$0xff]
  %824 = vset.pattern.permute.xlu0 0
  %825 = vperm.xlu0 %824, %v821
  %v826 = vpop.permute.xlu0 %825
  %829 = vset.pattern.permute.xlu0 0
  %830 = vperm.xlu0 %829, %v822
  %v831 = vpop.permute.xlu0 %830
  %v837 = vunpack.c.l.b16 %v525
  %v838 = vunpack.c.h.b16 %v525
  %v839 = vunpack.c.l.b16 %v526
  %v840 = vunpack.c.l.b16 %v527
  %v841 = vunpack.c.h.b16 %v527
  %v842 = vunpack.c.l.b16 %v528
  %v843 = vpack.c.b16 %v840, %v837
  %v844 = vpack.c.b16 %v841, %v838
  %v845 = vpack.c.b16 %v842, %v839
  %vm848 = vcmask 261120
  %v850 = vsel %vm848, %v845, 0
  %852 = vmatprep.subr.bf16.mxu0 %v786
  %853 = vmatpush1.bf16.msra.mxu0 %v785
  %854 = vmatprep.subr.bf16.mxu0 %v788
  %855 = vmatpush1.bf16.msra.mxu0 %v787
  %856 = vmatprep.subr.bf16.mxu0 %v790
  %857 = vmatpush1.bf16.msra.mxu0 %v789
  %858 = vmatprep.subr.bf16.mxu0 %v792
  %859 = vmatpush1.bf16.msra.mxu0 %v791
  %860 = vmatprep.subr.bf16.mxu0 %v794
  %861 = vmatpush1.bf16.msra.mxu0 %v793
  %862 = vmatprep.subr.bf16.mxu0 %v796
  %863 = vmatpush1.bf16.msra.mxu0 %v795
  %864 = vmatprep.subr.bf16.mxu0 %v798
  %865 = vmatpush1.bf16.msra.mxu0 %v797
  %866 = vmatprep.subr.bf16.mxu0 %v800
  %867 = vmatpush1.bf16.msra.mxu0 %v799
  %868 = vmatprep.subr.bf16.mxu0 %v802
  %869 = vmatpush1.bf16.msra.mxu0 %v801
  %870 = vmatprep.subr.bf16.mxu0 %v804
  %871 = vmatpush1.bf16.msra.mxu0 %v803
  %872 = vmatprep.subr.bf16.mxu0 %v806
  %873 = vmatpush1.bf16.msra.mxu0 %v805
  %874 = vmatprep.subr.bf16.mxu0 %v808
  %875 = vmatpush1.bf16.msra.mxu0 %v807
  %876 = vmatprep.subr.bf16.mxu0 %v810
  %877 = vmatpush1.bf16.msra.mxu0 %v809
  %878 = vmatprep.subr.bf16.mxu0 %v812
  %879 = vmatpush1.bf16.msra.mxu0 %v811
  %880 = vmatprep.subr.bf16.mxu0 %v814
  %881 = vmatpush1.bf16.msra.mxu0 %v813
  %882 = vmatprep.subr.bf16.mxu0 %v816
  %883 = vmatpush1.bf16.msra.mxu0 %v815
  %884 = vmatprep.mubr.bf16.mxu0 %v844
  %885 = vmatmul.mubr.bf16.gmra.mrb[0].mxu0 %v843
  %v886 = vpop.f32.mrb[0].mxu0
  %v887 = vadd.f32 %v826, %v886
  %v888 = vpop.f32.mrb[0].mxu0
  %v889 = vadd.f32 %v826, %v888
  %v890 = vpop.f32.mrb[0].mxu0
  %v891 = vadd.f32 %v831, %v890
  %v892 = vpop.f32.mrb[0].mxu0
  %v893 = vadd.f32 %v831, %v892
  %894 = vdwg.mxu0
  %895 = vmatprep.subr.bf16.mxu0 %v818
  %896 = vmatpush1.bf16.msra.mxu0 %v817
  %897 = vmatprep.subr.bf16.mxu0 %v820
  %898 = vmatpush1.bf16.msra.mxu0 %v819
  %899 = vmatprep.subr.bf16.mxu0 0
  %900 = vmatpush1.bf16.msra.mxu0 0
  %901 = vmatprep.subr.bf16.mxu0 0
  %902 = vmatpush1.bf16.msra.mxu0 0
  %903 = vmatprep.subr.bf16.mxu0 0
  %904 = vmatpush1.bf16.msra.mxu0 0
  %905 = vmatprep.subr.bf16.mxu0 0
  %906 = vmatpush1.bf16.msra.mxu0 0
  %907 = vmatprep.subr.bf16.mxu0 0
  %908 = vmatpush1.bf16.msra.mxu0 0
  %909 = vmatprep.subr.bf16.mxu0 0
  %910 = vmatpush1.bf16.msra.mxu0 0
  %911 = vmatprep.subr.bf16.mxu0 0
  %912 = vmatpush1.bf16.msra.mxu0 0
  %913 = vmatprep.subr.bf16.mxu0 0
  %914 = vmatpush1.bf16.msra.mxu0 0
  %915 = vmatprep.subr.bf16.mxu0 0
  %916 = vmatpush1.bf16.msra.mxu0 0
  %917 = vmatprep.subr.bf16.mxu0 0
  %918 = vmatpush1.bf16.msra.mxu0 0
  %919 = vmatprep.subr.bf16.mxu0 0
  %920 = vmatpush1.bf16.msra.mxu0 0
  %921 = vmatprep.subr.bf16.mxu0 0
  %922 = vmatpush1.bf16.msra.mxu0 0
  %923 = vmatprep.subr.bf16.mxu0 0
  %924 = vmatpush1.bf16.msra.mxu0 0
  %925 = vmatprep.subr.bf16.mxu0 0
  %926 = vmatpush1.bf16.msra.mxu0 0
  %927 = vmatprep.mubr.bf16.mxu0 0
  %928 = vmatmul.mubr.bf16.gmra.mrb[0].mxu0 %v850
  %v929 = vpop.f32.mrb[0].mxu0
  %v930 = vadd.f32 %v887, %v929
  %v931 = vpop.f32.mrb[0].mxu0
  %v932 = vadd.f32 %v889, %v931
  %v933 = vpop.f32.mrb[0].mxu0
  %v934 = vadd.f32 %v891, %v933
  %v935 = vpop.f32.mrb[0].mxu0
  %v936 = vadd.f32 %v893, %v935
  %937 = vdwg.mxu0
  %v938 = vld [vmem:[%s7] sm:$0xff]
  %v939 = vld [vmem:[%s7 + $0x8] sm:$0xff]
  %v940 = vld [vmem:[%s8] sm:$0xff]
  %v941 = vld [vmem:[%s8 + $0x8] sm:$0xff]
  %v942 = vadd.f32 %v930, %v932
  %943 = vadd.xlane.f32.xlu0 %v942
  %v944 = vpop.xlane.xlu0 %943
  %v945 = vadd.f32 %v934, %v936
  %946 = vadd.xlane.f32.xlu0 %v945
  %v947 = vpop.xlane.xlu0 %946
  %v948 = vmul.f32 %v944, 0.00390625
  %v949 = vmul.f32 %v947, 0.00390625
  %v950 = vmul.f32 %v930, %v930
  %v951 = vmul.f32 %v932, %v932
  %v952 = vmul.f32 %v934, %v934
  %v953 = vmul.f32 %v936, %v936
  %v954 = vadd.f32 %v950, %v951
  %955 = vadd.xlane.f32.xlu0 %v954
  %v956 = vpop.xlane.xlu0 %955
  %v957 = vadd.f32 %v952, %v953
  %958 = vadd.xlane.f32.xlu0 %v957
  %v959 = vpop.xlane.xlu0 %958
  %v960 = vmul.f32 %v956, 0.00390625
  %v961 = vmul.f32 %v959, 0.00390625
  %v962 = vmul.f32 %v948, %v948
  %v963 = vmul.f32 %v949, %v949
  %v964 = vsub.f32 %v960, %v962
  %v965 = vsub.f32 %v961, %v963
  %v966 = vmax.f32 %v964, 0.0
  %v967 = vmax.f32 %v965, 0.0
  %v968 = vadd.f32 %v966, 1e-05
  %v969 = vadd.f32 %v967, 1e-05
  %v970 = vrsqrt.pop %v968
  %v971 = vrsqrt.pop %v969
  %v972 = vmul.f32 %v938, %v970
  %v973 = vmul.f32 %v939, %v971
  %v974 = vmul.f32 %v948, %v972
  %v975 = vmul.f32 %v949, %v973
  %v976 = vsub.f32 %v940, %v974
  %v977 = vsub.f32 %v941, %v975
  %979 = vset.pattern.permute.xlu0 0
  %980 = vperm.xlu0 %979, %v972
  %v981 = vpop.permute.xlu0 %980
  %984 = vset.pattern.permute.xlu0 0
  %985 = vperm.xlu0 %984, %v973
  %v986 = vpop.permute.xlu0 %985
  %v988 = vmul.f32 %v930, %v981
  %v989 = vmul.f32 %v932, %v981
  %v990 = vmul.f32 %v934, %v986
  %v991 = vmul.f32 %v936, %v986
  %993 = vset.pattern.permute.xlu0 0
  %994 = vperm.xlu0 %993, %v976
  %v995 = vpop.permute.xlu0 %994
  %998 = vset.pattern.permute.xlu0 0
  %999 = vperm.xlu0 %998, %v977
  %v1000 = vpop.permute.xlu0 %999
  %v1002 = vadd.f32 %v988, %v995
  %v1003 = vadd.f32 %v989, %v995
  %v1004 = vadd.f32 %v990, %v1000
  %v1005 = vadd.f32 %v991, %v1000
  %v1006 = vmax.f32 %v1002, 0.0
  %v1007 = vmax.f32 %v1003, 0.0
  %v1008 = vmax.f32 %v1004, 0.0
  %v1009 = vmax.f32 %v1005, 0.0
  %v1010 = vld [vmem:[%s9] sm:$0x3]
  %v1011 = vpack.c.bf16 %v1008, %v1006
  %v1012 = vpack.c.bf16 %v1009, %v1007
  %v1013 = vld [vmem:[%s10] sm:$0x7]
  %1015 = vset.pattern.permute.xlu0 0
  %1016 = vperm.xlu0 %1015, %v1013
  %v1017 = vpop.permute.xlu0 %1016
  %vm1019 = vcmask 130048
  %v1021 = vsel %vm1019, %v1010, 0
  %1023 = vmatprep.subr.bf16.mxu0 %v1012
  %1024 = vmatpush1.bf16.msra.mxu0 %v1011
  %1025 = vmatprep.subr.bf16.mxu0 0
  %1026 = vmatpush1.bf16.msra.mxu0 0
  %1027 = vmatprep.subr.bf16.mxu0 0
  %1028 = vmatpush1.bf16.msra.mxu0 0
  %1029 = vmatprep.subr.bf16.mxu0 0
  %1030 = vmatpush1.bf16.msra.mxu0 0
  %1031 = vmatprep.subr.bf16.mxu0 0
  %1032 = vmatpush1.bf16.msra.mxu0 0
  %1033 = vmatprep.subr.bf16.mxu0 0
  %1034 = vmatpush1.bf16.msra.mxu0 0
  %1035 = vmatprep.subr.bf16.mxu0 0
  %1036 = vmatpush1.bf16.msra.mxu0 0
  %1037 = vmatprep.subr.bf16.mxu0 0
  %1038 = vmatpush1.bf16.msra.mxu0 0
  %1039 = vmatprep.subr.bf16.mxu0 0
  %1040 = vmatpush1.bf16.msra.mxu0 0
  %1041 = vmatprep.subr.bf16.mxu0 0
  %1042 = vmatpush1.bf16.msra.mxu0 0
  %1043 = vmatprep.subr.bf16.mxu0 0
  %1044 = vmatpush1.bf16.msra.mxu0 0
  %1045 = vmatprep.subr.bf16.mxu0 0
  %1046 = vmatpush1.bf16.msra.mxu0 0
  %1047 = vmatprep.subr.bf16.mxu0 0
  %1048 = vmatpush1.bf16.msra.mxu0 0
  %1049 = vmatprep.subr.bf16.mxu0 0
  %1050 = vmatpush1.bf16.msra.mxu0 0
  %1051 = vmatprep.subr.bf16.mxu0 0
  %1052 = vmatpush1.bf16.msra.mxu0 0
  %1053 = vmatprep.subr.bf16.mxu0 0
  %1054 = vmatpush1.bf16.msra.mxu0 0
  %1055 = vmatprep.mubr.bf16.mxu0 0
  %1056 = vmatmul.mubr.bf16.gmra.mrb[0].mxu0 %v1021
  %v1057 = vpop.f32.mrb[0].mxu0
  %v1058 = vadd.f32 %v1017, %v1057
  %v1059 = vpop.f32.mrb[0].mxu0
  %v1060 = vadd.f32 %v1017, %v1059
  %v1061 = vpop.f32.mrb[0].mxu0
  %v1062 = vpop.f32.mrb[0].mxu0
  %1063 = vdwg.mxu0
  %v1066 = vcombine.low %v1058, %v1060
  %1068 = vst [vmem:[%s11] sm:$0x77] %v1066
  // Predicated region
  $region46: #{simple_cnn_forward.1} parent=0 // pred_check
    _
  $region47: #{simple_cnn_forward.1} parent=0 // pred_check_branch
    %1070 = sbr.rel (0) target = $region49
  $region48: #{simple_cnn_forward.1} parent=0 // pred_region
    _
  $region49: #{simple_cnn_forward.1} parent=0 // pred_fallthru
    _
  // Predicated region
  $region50: #{simple_cnn_forward.1} parent=0 // pred_check
    _
  $region51: #{simple_cnn_forward.1} parent=0 // pred_check_branch
    %1072 = sbr.rel (0) target = $region53
  $region52: #{simple_cnn_forward.1} parent=0 // pred_region
    _
  $region53: #{simple_cnn_forward.1} parent=0 // pred_fallthru
    _

</llo_original>
